<compile_context>
chip_gen: v7x
topology: tpu7x:2x2x1
jax: 0.10.0
libtpu: 0.0.40
codegen_flags: <defaults>
</compile_context>

<pallas_src>
import functools
import math

import jax
import jax.numpy as jnp
from jax.experimental import pallas as pl
from jax.experimental.pallas import tpu as pltpu


def _round_up(x, m):
    return ((x + m - 1) // m) * m


# --------------------------------------------------------------------------
# Pallas kernel: full MLP forward (layer count / widths / offsets static)
# refs = (z_aug, param_slab, out)
# --------------------------------------------------------------------------
def _decoder_mlp_kernel(num_layers, conditional, onehot_n, latent_dim,
                        w_offs, w_rows, out_wids, y_off, bias_off,
                        z_ref, p_ref, out_ref):
    h = z_ref[...]                                            # (TB, aug_w) f32

    # ---- layer 0 -----------------------------------------------------------
    w0 = p_ref[w_offs[0]:w_offs[0] + w_rows[0], :out_wids[0]]
    acc = jnp.dot(h, w0, preferred_element_type=jnp.float32)
    if conditional:
        # Label rides along as column `latent_dim` of the z block; the one-hot
        # matmul is replaced by `onehot_n` broadcast select-accumulates (VPU).
        yv = h[:, latent_dim:latent_dim + 1]                  # (TB, 1) float label
        for k in range(onehot_n):
            row = p_ref[y_off + k:y_off + k + 1, :out_wids[0]]   # (1, h0_pad)
            acc = acc + jnp.where(yv == float(k), 1.0, 0.0) * row
    h = acc + p_ref[bias_off:bias_off + 1, :out_wids[0]]
    h = jnp.maximum(h, 0.0) if num_layers > 1 else jax.nn.sigmoid(h)

    # ---- layers 1..L-1 -----------------------------------------------------
    for li in range(1, num_layers):
        w = p_ref[w_offs[li]:w_offs[li] + w_rows[li], :out_wids[li]]
        h = jnp.dot(h, w, preferred_element_type=jnp.float32)
        h = h + p_ref[bias_off + li:bias_off + li + 1, :out_wids[li]]
        h = jnp.maximum(h, 0.0) if li < num_layers - 1 else jax.nn.sigmoid(h)

    out_ref[...] = h                                          # lane-dense (TB, x_pad)


# --------------------------------------------------------------------------
# Decoder module (JAX / Pallas)
# --------------------------------------------------------------------------
class PallasDecoder:
    LANE = 128
    SUBLANE = 8
    ONEHOT_N = 5                      # Decoder.forward hard-codes idx2onehot(y, 5)
    MAX_BATCH_TILE = 4096             # rows per grid step (further capped by VMEM)
    TILE_ACT_BYTES = 4 * 1024 * 1024  # per-tile activation footprint budget

    def __init__(self, x_dim, y_dim, latent_dim, conditional,
                 decoder_layersizes, normparams, key):
        self.conditional = conditional
        self.normparams = normparams  # stored but unused (matches the torch forward)
        self.x_dim = x_dim
        self.y_dim = y_dim
        self.latent_dim = latent_dim
        if conditional:
            assert y_dim == self.ONEHOT_N, \
                "Decoder.forward hard-codes a one-hot width of 5"

        layer_sizes = list(decoder_layersizes)
        layer_sizes.insert(0, latent_dim)
        if conditional:
            layer_sizes[0] += y_dim
        layer_sizes.append(x_dim)
        self.layer_sizes = layer_sizes
        self.num_layers = len(layer_sizes) - 1

        # ---- nn.Linear-style init: U(-k, k), k = 1/sqrt(fan_in) -------------
        ref_weights, ref_biases = [], []
        for in_size, out_size in zip(layer_sizes[:-1], layer_sizes[1:]):
            key, kw, kb = jax.random.split(key, 3)
            bound = 1.0 / math.sqrt(in_size)
            ref_weights.append(jax.random.uniform(
                kw, (in_size, out_size), jnp.float32, minval=-bound, maxval=bound))
            ref_biases.append(jax.random.uniform(
                kb, (out_size,), jnp.float32, minval=-bound, maxval=bound))
        self._ref_weights = ref_weights   # unpadded, for the pure-JAX reference
        self._ref_biases = ref_biases

        # ---- kernel-side layout ---------------------------------------------
        # Every layer's output width padded to 128 lanes -> unmasked MXU / VPU /
        # store ops.  Zero padding is exact (padded rows/cols never leak).
        self.h_pad = tuple(_round_up(s, self.LANE) for s in layer_sizes[1:])
        self.x_pad = self.h_pad[-1]
        # z block carries one extra f32 column with the class label when
        # conditional (no separate int32 operand), rounded to a sublane multiple.
        self.aug_w = _round_up(latent_dim + (1 if conditional else 0), self.SUBLANE)

        w_max = max(self.h_pad)
        w_offs, w_rows = [], []
        r = 0
        w_offs.append(r); w_rows.append(self.aug_w); r += self.aug_w       # W0 (z part)
        if conditional:
            self.y_off = r
            r += _round_up(self.ONEHOT_N, self.SUBLANE)                    # W0 (y part)
        else:
            self.y_off = 0
        for li in range(1, self.num_layers):
            w_offs.append(r); w_rows.append(self.h_pad[li - 1])
            r += self.h_pad[li - 1]
        self.bias_off = r
        r += _round_up(self.num_layers, self.SUBLANE)                      # bias rows
        self.w_offs = tuple(w_offs)
        self.w_rows = tuple(w_rows)

        # Single zero-padded parameter slab (all weights + all biases) -> one
        # VMEM-resident DMA operand with a constant index_map.
        slab = jnp.zeros((r, w_max), jnp.float32)
        w0 = ref_weights[0]
        slab = slab.at[0:latent_dim, :w0.shape[1]].set(w0[:latent_dim])
        if conditional:
            slab = slab.at[self.y_off:self.y_off + y_dim, :w0.shape[1]].set(
                w0[latent_dim:latent_dim + y_dim])
        for li in range(1, self.num_layers):
            w = ref_weights[li]
            slab = slab.at[self.w_offs[li]:self.w_offs[li] + w.shape[0],
                           :w.shape[1]].set(w)
        for li, b in enumerate(ref_biases):
            slab = slab.at[self.bias_off + li, :b.shape[0]].set(b)
        self.param_slab = slab

    def __call__(self, z, y=None):
        batch = z.shape[0]
        assert z.shape[1] == self.latent_dim
        z = z.astype(jnp.float32)

        # ---- balanced batch tiling ------------------------------------------
        # Tiles are multiples of 8 rows, per-tile activation footprint capped,
        # and we use >= 2 grid steps when possible (both v7x TensorCores work).
        max_w = max(self.h_pad + (self.aug_w,))
        cap = min(self.MAX_BATCH_TILE,
                  max(self.SUBLANE,
                      (self.TILE_ACT_BYTES // (4 * max_w))
                      // self.SUBLANE * self.SUBLANE))
        b8 = _round_up(batch, self.SUBLANE)
        want_tiles = max(pl.cdiv(b8, cap), 2 if b8 >= 2 * self.SUBLANE else 1)
        tb = min(cap, _round_up(pl.cdiv(batch, want_tiles), self.SUBLANE))
        num_tiles = pl.cdiv(batch, tb)
        b_pad = num_tiles * tb

        # ---- augmented z block: [ z | label | zero pad ] ----------------------
        z_aug = jnp.zeros((b_pad, self.aug_w), jnp.float32)
        z_aug = z_aug.at[:batch, :self.latent_dim].set(z)
        if self.conditional:
            y_idx = jnp.asarray(y).reshape(-1)[:batch].astype(jnp.float32)
            z_aug = z_aug.at[:batch, self.latent_dim].set(y_idx)

        kernel = functools.partial(
            _decoder_mlp_kernel, self.num_layers, self.conditional,
            self.ONEHOT_N, self.latent_dim, self.w_offs, self.w_rows,
            self.h_pad, self.y_off, self.bias_off)

        out = pl.pallas_call(
            kernel,
            out_shape=jax.ShapeDtypeStruct((b_pad, self.x_pad), jnp.float32),
            grid=(num_tiles,),
            in_specs=[
                pl.BlockSpec((tb, self.aug_w), lambda i: (i, 0)),
                # full parameter slab, constant index_map -> stays in VMEM
                pl.BlockSpec(self.param_slab.shape, lambda i: (0, 0)),
            ],
            # Lane-dense output slab -> unmasked vst.  (On v5e with very small
            # x_dim an unpadded (b_pad, x_dim) output may win; benchmark before
            # switching — kept uniform here.)
            out_specs=pl.BlockSpec((tb, self.x_pad), lambda i: (i, 0)),
            compiler_params=pltpu.CompilerParams(
                dimension_semantics=("parallel",),      # shard batch across TCs (v7x)
                vmem_limit_bytes=32 * 1024 * 1024,      # portable incl. v7x (64 MiB)
            ),
        )(z_aug, self.param_slab)
        return out[:batch, :self.x_dim]


# --------------------------------------------------------------------------
# Pure-JAX reference (matches the torch forward semantics)
# --------------------------------------------------------------------------
def reference_forward(dec, z, y=None):
    h = z
    if dec.conditional:
        y_idx = jnp.asarray(y).reshape(-1)
        h = jnp.concatenate(
            [h, jax.nn.one_hot(y_idx, PallasDecoder.ONEHOT_N, dtype=h.dtype)],
            axis=-1)
    for i, (w, b) in enumerate(zip(dec._ref_weights, dec._ref_biases)):
        h = h @ w + b[None, :]
        h = jnp.maximum(h, 0.0) if i < dec.num_layers - 1 else jax.nn.sigmoid(h)
    return h


if __name__ == "__main__":
    key = jax.random.PRNGKey(0)
    k_params, k_params2, k_z, k_y = jax.random.split(key, 4)

    batch = 16
    x_dim = 12
    y_dim = 5          # must be 5: forward hard-codes one-hot width 5
    latent_dim = 8
    decoder_layersizes = [32, 16]

    # Conditional decoder
    dec = PallasDecoder(x_dim, y_dim, latent_dim, True,
                        decoder_layersizes, normparams=None, key=k_params)
    z = jax.random.normal(k_z, (batch, latent_dim), jnp.float32)
    y = jax.random.randint(k_y, (batch,), 0, 5)

    out = jax.block_until_ready(dec(z, y))
    ref = reference_forward(dec, z, y)
    assert out.shape == (batch, x_dim)
    assert jnp.allclose(out, ref, atol=1e-5, rtol=1e-5)

    # Unconditional decoder (exercises the non-conditional kernel path)
    dec_nc = PallasDecoder(x_dim, y_dim, latent_dim, False,
                           decoder_layersizes, normparams=None, key=k_params2)
    out_nc = jax.block_until_ready(dec_nc(z))
    ref_nc = reference_forward(dec_nc, z)
    assert out_nc.shape == (batch, x_dim)
    assert jnp.allclose(out_nc, ref_nc, atol=1e-5, rtol=1e-5)

    print("KERNEL_OK")
</pallas_src>

<mosaic_0001>
module attributes {stable_mosaic.version = 11 : i64} {
  func.func @_decoder_mlp_kernel(%arg0: i32, %arg1: memref<8x16xf32, #tpu.memory_space<vmem>>, %arg2: memref<288x128xf32, #tpu.memory_space<vmem>>, %arg3: memref<8x128xf32, #tpu.memory_space<vmem>>) attributes {dimension_semantics = [#tpu.dimension_semantics<parallel>], iteration_bounds = array<i64: 2>, scalar_prefetch = 0 : i64, scratch_operands = 0 : i64, tpu.core_type = #tpu.core_type<tc>, window_params = [{transform_indices = @transform_0, window_bounds = array<i64: 8, 16>}, {pipeline_mode = #tpu.pipeline_mode<synchronous>, transform_indices = @transform_1, window_bounds = array<i64: 288, 128>}, {transform_indices = @transform_2, window_bounds = array<i64: 8, 128>}]} {
    %c0 = arith.constant 0 : index
    %c0_0 = arith.constant 0 : index
    %0 = vector.load %arg1[%c0, %c0_0] : memref<8x16xf32, #tpu.memory_space<vmem>>, vector<8x16xf32>
    %c0_1 = arith.constant 0 : index
    %c0_2 = arith.constant 0 : index
    %1 = vector.load %arg2[%c0_1, %c0_2] : memref<288x128xf32, #tpu.memory_space<vmem>>, vector<16x128xf32>
    %cst = arith.constant dense<0.000000e+00> : vector<8x128xf32>
    %2 = tpu.matmul %0, %1, %cst {dimension_numbers = #tpu.dot_dimension_numbers<[1], [0], [0], [1], [0, 0, 1, 1], [], []>} : vector<8x16xf32>, vector<16x128xf32>, vector<8x128xf32> -> vector<8x128xf32>
    %3 = vector.extract_strided_slice %0 {offsets = [0, 8], sizes = [8, 1], strides = [1, 1]} : vector<8x16xf32> to vector<8x1xf32>
    %c16 = arith.constant 16 : index
    %c0_3 = arith.constant 0 : index
    %4 = vector.load %arg2[%c16, %c0_3] : memref<288x128xf32, #tpu.memory_space<vmem>>, vector<1x128xf32>
    %cst_4 = arith.constant 0.000000e+00 : f32
    %5 = vector.broadcast %cst_4 : f32 to vector<8x1xf32>
    %6 = arith.cmpf oeq, %3, %5 : vector<8x1xf32>
    %cst_5 = arith.constant 1.000000e+00 : f32
    %cst_6 = arith.constant 0.000000e+00 : f32
    %7 = vector.broadcast %cst_5 : f32 to vector<8x1xf32>
    %8 = vector.broadcast %cst_6 : f32 to vector<8x1xf32>
    %9 = arith.select %6, %7, %8 : vector<8x1xi1>, vector<8x1xf32>
    %10 = vector.broadcast %9 : vector<8x1xf32> to vector<8x128xf32>
    %11 = vector.broadcast %4 : vector<1x128xf32> to vector<8x128xf32>
    %12 = arith.mulf %10, %11 : vector<8x128xf32>
    %13 = arith.addf %2, %12 : vector<8x128xf32>
    %c17 = arith.constant 17 : index
    %c0_7 = arith.constant 0 : index
    %14 = vector.load %arg2[%c17, %c0_7] : memref<288x128xf32, #tpu.memory_space<vmem>>, vector<1x128xf32>
    %cst_8 = arith.constant 1.000000e+00 : f32
    %15 = vector.broadcast %cst_8 : f32 to vector<8x1xf32>
    %16 = arith.cmpf oeq, %3, %15 : vector<8x1xf32>
    %cst_9 = arith.constant 1.000000e+00 : f32
    %cst_10 = arith.constant 0.000000e+00 : f32
    %17 = vector.broadcast %cst_9 : f32 to vector<8x1xf32>
    %18 = vector.broadcast %cst_10 : f32 to vector<8x1xf32>
    %19 = arith.select %16, %17, %18 : vector<8x1xi1>, vector<8x1xf32>
    %20 = vector.broadcast %19 : vector<8x1xf32> to vector<8x128xf32>
    %21 = vector.broadcast %14 : vector<1x128xf32> to vector<8x128xf32>
    %22 = arith.mulf %20, %21 : vector<8x128xf32>
    %23 = arith.addf %13, %22 : vector<8x128xf32>
    %c18 = arith.constant 18 : index
    %c0_11 = arith.constant 0 : index
    %24 = vector.load %arg2[%c18, %c0_11] : memref<288x128xf32, #tpu.memory_space<vmem>>, vector<1x128xf32>
    %cst_12 = arith.constant 2.000000e+00 : f32
    %25 = vector.broadcast %cst_12 : f32 to vector<8x1xf32>
    %26 = arith.cmpf oeq, %3, %25 : vector<8x1xf32>
    %cst_13 = arith.constant 1.000000e+00 : f32
    %cst_14 = arith.constant 0.000000e+00 : f32
    %27 = vector.broadcast %cst_13 : f32 to vector<8x1xf32>
    %28 = vector.broadcast %cst_14 : f32 to vector<8x1xf32>
    %29 = arith.select %26, %27, %28 : vector<8x1xi1>, vector<8x1xf32>
    %30 = vector.broadcast %29 : vector<8x1xf32> to vector<8x128xf32>
    %31 = vector.broadcast %24 : vector<1x128xf32> to vector<8x128xf32>
    %32 = arith.mulf %30, %31 : vector<8x128xf32>
    %33 = arith.addf %23, %32 : vector<8x128xf32>
    %c19 = arith.constant 19 : index
    %c0_15 = arith.constant 0 : index
    %34 = vector.load %arg2[%c19, %c0_15] : memref<288x128xf32, #tpu.memory_space<vmem>>, vector<1x128xf32>
    %cst_16 = arith.constant 3.000000e+00 : f32
    %35 = vector.broadcast %cst_16 : f32 to vector<8x1xf32>
    %36 = arith.cmpf oeq, %3, %35 : vector<8x1xf32>
    %cst_17 = arith.constant 1.000000e+00 : f32
    %cst_18 = arith.constant 0.000000e+00 : f32
    %37 = vector.broadcast %cst_17 : f32 to vector<8x1xf32>
    %38 = vector.broadcast %cst_18 : f32 to vector<8x1xf32>
    %39 = arith.select %36, %37, %38 : vector<8x1xi1>, vector<8x1xf32>
    %40 = vector.broadcast %39 : vector<8x1xf32> to vector<8x128xf32>
    %41 = vector.broadcast %34 : vector<1x128xf32> to vector<8x128xf32>
    %42 = arith.mulf %40, %41 : vector<8x128xf32>
    %43 = arith.addf %33, %42 : vector<8x128xf32>
    %c20 = arith.constant 20 : index
    %c0_19 = arith.constant 0 : index
    %44 = vector.load %arg2[%c20, %c0_19] : memref<288x128xf32, #tpu.memory_space<vmem>>, vector<1x128xf32>
    %cst_20 = arith.constant 4.000000e+00 : f32
    %45 = vector.broadcast %cst_20 : f32 to vector<8x1xf32>
    %46 = arith.cmpf oeq, %3, %45 : vector<8x1xf32>
    %cst_21 = arith.constant 1.000000e+00 : f32
    %cst_22 = arith.constant 0.000000e+00 : f32
    %47 = vector.broadcast %cst_21 : f32 to vector<8x1xf32>
    %48 = vector.broadcast %cst_22 : f32 to vector<8x1xf32>
    %49 = arith.select %46, %47, %48 : vector<8x1xi1>, vector<8x1xf32>
    %50 = vector.broadcast %49 : vector<8x1xf32> to vector<8x128xf32>
    %51 = vector.broadcast %44 : vector<1x128xf32> to vector<8x128xf32>
    %52 = arith.mulf %50, %51 : vector<8x128xf32>
    %53 = arith.addf %43, %52 : vector<8x128xf32>
    %c280 = arith.constant 280 : index
    %c0_23 = arith.constant 0 : index
    %54 = vector.load %arg2[%c280, %c0_23] : memref<288x128xf32, #tpu.memory_space<vmem>>, vector<1x128xf32>
    %55 = vector.broadcast %54 : vector<1x128xf32> to vector<8x128xf32>
    %56 = arith.addf %53, %55 : vector<8x128xf32>
    %cst_24 = arith.constant 0.000000e+00 : f32
    %57 = vector.broadcast %cst_24 : f32 to vector<8x128xf32>
    %58 = arith.maximumf %56, %57 : vector<8x128xf32>
    %c24 = arith.constant 24 : index
    %c0_25 = arith.constant 0 : index
    %59 = vector.load %arg2[%c24, %c0_25] : memref<288x128xf32, #tpu.memory_space<vmem>>, vector<128x128xf32>
    %cst_26 = arith.constant dense<0.000000e+00> : vector<8x128xf32>
    %60 = tpu.matmul %58, %59, %cst_26 {dimension_numbers = #tpu.dot_dimension_numbers<[1], [0], [0], [1], [0, 0, 1, 1], [], []>} : vector<8x128xf32>, vector<128x128xf32>, vector<8x128xf32> -> vector<8x128xf32>
    %c281 = arith.constant 281 : index
    %c0_27 = arith.constant 0 : index
    %61 = vector.load %arg2[%c281, %c0_27] : memref<288x128xf32, #tpu.memory_space<vmem>>, vector<1x128xf32>
    %62 = vector.broadcast %61 : vector<1x128xf32> to vector<8x128xf32>
    %63 = arith.addf %60, %62 : vector<8x128xf32>
    %cst_28 = arith.constant 0.000000e+00 : f32
    %64 = vector.broadcast %cst_28 : f32 to vector<8x128xf32>
    %65 = arith.maximumf %63, %64 : vector<8x128xf32>
    %c152 = arith.constant 152 : index
    %c0_29 = arith.constant 0 : index
    %66 = vector.load %arg2[%c152, %c0_29] : memref<288x128xf32, #tpu.memory_space<vmem>>, vector<128x128xf32>
    %cst_30 = arith.constant dense<0.000000e+00> : vector<8x128xf32>
    %67 = tpu.matmul %65, %66, %cst_30 {dimension_numbers = #tpu.dot_dimension_numbers<[1], [0], [0], [1], [0, 0, 1, 1], [], []>} : vector<8x128xf32>, vector<128x128xf32>, vector<8x128xf32> -> vector<8x128xf32>
    %c282 = arith.constant 282 : index
    %c0_31 = arith.constant 0 : index
    %68 = vector.load %arg2[%c282, %c0_31] : memref<288x128xf32, #tpu.memory_space<vmem>>, vector<1x128xf32>
    %69 = vector.broadcast %68 : vector<1x128xf32> to vector<8x128xf32>
    %70 = arith.addf %67, %69 : vector<8x128xf32>
    %71 = arith.negf %70 : vector<8x128xf32>
    %72 = math.exp %71 : vector<8x128xf32>
    %cst_32 = arith.constant 1.000000e+00 : f32
    %73 = vector.broadcast %cst_32 : f32 to vector<8x128xf32>
    %74 = arith.addf %73, %72 : vector<8x128xf32>
    %75 = arith.divf %73, %74 : vector<8x128xf32>
    %c0_33 = arith.constant 0 : index
    %c0_34 = arith.constant 0 : index
    %76 = vector.load %arg3[%c0_33, %c0_34] : memref<8x128xf32, #tpu.memory_space<vmem>>, vector<8x128xf32>
    tpu.vector_store %arg3[%c0_33, %c0_34], %75 {strides = array<i32>} : memref<8x128xf32, #tpu.memory_space<vmem>>, vector<8x128xf32>,
    return
  }
  func.func @transform_0(%arg0: i32) -> (i32, i32) {
    %c0_i32 = arith.constant 0 : i32
    %c0_i32_0 = arith.constant 0 : i32
    return %arg0, %c0_i32 : i32, i32
  }
  func.func @transform_1(%arg0: i32) -> (i32, i32) {
    %c0_i32 = arith.constant 0 : i32
    %c0_i32_0 = arith.constant 0 : i32
    %c0_i32_1 = arith.constant 0 : i32
    return %c0_i32, %c0_i32_0 : i32, i32
  }
  func.func @transform_2(%arg0: i32) -> (i32, i32) {
    %c0_i32 = arith.constant 0 : i32
    %c0_i32_0 = arith.constant 0 : i32
    return %arg0, %c0_i32 : i32, i32
  }
}

</mosaic_0001>

<llo_original>
// kernel: tpu_custom_call.1
$region0: #{tpu_custom_call.1}
  #allocation0 [shape = 'u32[]', space=smem, size = 0x4, offset = 0x4, fixed_abs, tag = 'smem constant byte address 0x4 - core index']
  #allocation1 [shape = 'u32[144,128]{1,0:T(1,128)}', space=vmem, size = 0x12000, scoped, tag = 'internal scratch']
  %s0 = inlined_call_operand.hbm [shape: f32[16,16], index: 0, kind: input, shape index: {}]
  %s1 = inlined_call_operand.hbm [shape: f32[288,128], index: 1, kind: input, shape index: {}]
  %s2 = inlined_call_operand.hbm [shape: f32[16,128], index: 2, kind: output, shape index: {}]
  %s3 = sld [smem:[#allocation0]]
  $region49: #{tpu_custom_call.1} parent=0
    _
  %s5 = ssub.s32 1, %s3
  %s6 = scalar_select 0, %s5, %s3
  $region1: #{tpu_custom_call.1} parent=0
    #allocation2 [shape = 'u8[8192]{0}', space=vmem, size = 0x2000, scoped, tag = 'input window, operand 0']
    #allocation3 [shape = 's32[2]{0}', space=sflag, size = 0x8, scoped, tag = 'scoped memory for tpu_custom_call.1']
    #allocation4 [shape = 's32[2]{0}', space=sflag, size = 0x8, scoped, tag = 'scoped memory for tpu_custom_call.1']
    #allocation5 [shape = 'u8[147456]{0}', space=vmem, size = 0x24000, scoped, tag = 'input window, operand 1, single buffered']
    #allocation6 [shape = 's32[1]{0}', space=sflag, size = 0x4, scoped, tag = 'scoped memory for tpu_custom_call.1']
    #allocation7 [shape = 'u8[8192]{0}', space=vmem, size = 0x2000, scoped, tag = 'output window, operand 0']
    %7 = vsyncpa [#allocation3], 0
    %s8 = scalar_lea.sflag [#allocation3], 1
    %9 = vsyncpa %s8, 0
    %10 = vsyncpa [#allocation6], 0
    %11 = vsyncpa [#allocation4], 0
    %s12 = scalar_lea.sflag [#allocation4], 1
    %13 = vsyncpa %s12, 0
    loop: start=0, step=1, limit=4
    $region2: #{tpu_custom_call.1} parent=1 // loop_pre_header
      _
    $region3: #{tpu_custom_call.1} parent=1 // loop_header
      %s15 = sphi 0, %s19
      %p16 = scmp.ge.s32.totalorder %s15, 4
      %s25 = sphi 0, %s27
      %s28 = sphi 0, %s25
      %s29 = sphi 0, %s28
      %s45 = sphi 0, %s29
      %s49 = sphi 0, %s49
      %s51 = sphi 0, %s49
      %s52 = sphi 0, %s51
      %s66 = sphi 0, %s52
      %s72 = sphi 0, %s74
      %s75 = sphi 0, %s72
      %s76 = sphi 0, %s75
      %s92 = sphi 0, %s76
    $region4: #{tpu_custom_call.1} parent=1 // loop_header_branch
      %18 = sbr.rel (%p16) target = $region8
    $region5: #{tpu_custom_call.1} parent=1 // loop_body
      %s20 = ssub.s32 %s15, 1
      %s21 = ssub.s32 %s15, 2
      %s22 = sadd.s32 %s15, 1
      %s23 = ssub.s32 %s15, %s22
      %p24 = scmp.eq.s32.totalorder %s23, 0
      %s26 = sadd.s32 %s25, 1
      %s27 = scalar_select %p24, %s25, %s26
      %p30 = pneg %p24
      %p31 = scmp.eq.s32.totalorder %s15, 1
      %p32 = por %p30, %p31
      %p33 = scmp.ne.s32.totalorder %s25, %s28
      %p34 = scmp.eq.s32.totalorder %s15, 0
      %p35 = por %p33, %p34
      %p36 = scmp.ne.s32.totalorder %s25, %s28
      %p37 = scmp.eq.s32.totalorder %s20, 1
      %p38 = por %p36, %p37
      %p39 = scmp.ne.s32.totalorder %s28, %s29
      %p40 = scmp.eq.s32.totalorder %s20, 0
      %p41 = por %p39, %p40
      %p42 = scmp.ne.s32.totalorder %s28, %s29
      %p43 = scmp.eq.s32.totalorder %s21, 1
      %p44 = por %p42, %p43
      %p46 = scmp.ne.s32.totalorder %s29, %s45
      %p47 = scmp.eq.s32.totalorder %s21, 0
      %p48 = por %p46, %p47
      %s50 = sadd.s32 %s49, 1
      %p53 = scmp.eq.s32.totalorder %s15, 1
      %p54 = scmp.ne.s32.totalorder %s49, %s51
      %p55 = scmp.eq.s32.totalorder %s15, 0
      %p56 = por %p54, %p55
      %p57 = scmp.ne.s32.totalorder %s49, %s51
      %p58 = scmp.eq.s32.totalorder %s20, 1
      %p59 = por %p57, %p58
      %p60 = scmp.ne.s32.totalorder %s51, %s52
      %p61 = scmp.eq.s32.totalorder %s20, 0
      %p62 = por %p60, %p61
      %p63 = scmp.ne.s32.totalorder %s51, %s52
      %p64 = scmp.eq.s32.totalorder %s21, 1
      %p65 = por %p63, %p64
      %p67 = scmp.ne.s32.totalorder %s52, %s66
      %p68 = scmp.eq.s32.totalorder %s21, 0
      %p69 = por %p67, %p68
      %s70 = ssub.s32 %s15, %s22
      %p71 = scmp.eq.s32.totalorder %s70, 0
      %s73 = sadd.s32 %s72, 1
      %s74 = scalar_select %p71, %s72, %s73
      %p77 = pneg %p71
      %p78 = scmp.eq.s32.totalorder %s15, 1
      %p79 = por %p77, %p78
      %p80 = scmp.ne.s32.totalorder %s72, %s75
      %p81 = scmp.eq.s32.totalorder %s15, 0
      %p82 = por %p80, %p81
      %p83 = scmp.ne.s32.totalorder %s72, %s75
      %p84 = scmp.eq.s32.totalorder %s20, 1
      %p85 = por %p83, %p84
      %p86 = scmp.ne.s32.totalorder %s75, %s76
      %p87 = scmp.eq.s32.totalorder %s20, 0
      %p88 = por %p86, %p87
      %p89 = scmp.ne.s32.totalorder %s75, %s76
      %p90 = scmp.eq.s32.totalorder %s21, 1
      %p91 = por %p89, %p90
      %p93 = scmp.ne.s32.totalorder %s76, %s92
      %p94 = scmp.eq.s32.totalorder %s21, 0
      %p95 = por %p93, %p94
      %p96 = scmp.le.s32.totalorder 1, %s15
      %p97 = scmp.lt.s32.totalorder %s15, 3
      %p98 = pnand %p96, %p97
      %p99 = pneg %p98
      // Predicated region
      $region9: #{tpu_custom_call.1} parent=5 // pred_check
        _
      $region10: #{tpu_custom_call.1} parent=5 // pred_check_branch
        %101 = sbr.rel (%p98) target = $region12
      $region11: #{tpu_custom_call.1} parent=5 // pred_region
        %s102 = ssub.s32 %s15, 1
        // Predicated region
        $region13: #{tpu_custom_call.1} parent=11 // pred_check
          %p103 = pneg %p62
        $region14: #{tpu_custom_call.1} parent=11 // pred_check_branch
          %105 = sbr.rel (%p103) target = $region16
        $region15: #{tpu_custom_call.1} parent=11 // pred_region
          %s107 = ssub.s32 4608, 4608
          %108 = vsyncadd [#allocation6], %s107
          %s109 = sshll.u32 [#allocation5], 4
          %s110 = int_to_ptr.vmem [resolvable:$true] %s109
          %115 = dma.hbm_to_vmem [thread:$0]  %s1, 4608, %s110, [#allocation6], 128, 128, 8
        $region16: #{tpu_custom_call.1} parent=11 // pred_fallthru
          _
      $region12: #{tpu_custom_call.1} parent=5 // pred_fallthru
        _
      %p116 = scmp.lt.s32.totalorder %s15, 2
      // Predicated region
      $region17: #{tpu_custom_call.1} parent=5 // pred_check
        %p117 = pneg %p116
      $region18: #{tpu_custom_call.1} parent=5 // pred_check_branch
        %119 = sbr.rel (%p117) target = $region20
      $region19: #{tpu_custom_call.1} parent=5 // pred_region
        // Predicated region
        $region21: #{tpu_custom_call.1} parent=19 // pred_check
          %p120 = pneg %p35
        $region22: #{tpu_custom_call.1} parent=19 // pred_check_branch
          %122 = sbr.rel (%p120) target = $region24
        $region23: #{tpu_custom_call.1} parent=19 // pred_region
          %s123 = sand.u32 %s25, 1
          %s124 = scalar_lea.sflag [#allocation3], %s123
          %s125 = sand.u32 %s25, 1
          %s126 = smul.addr %s125, 8
          %s127 = scalar_lea.vmem [#allocation2], %s126
          %s129 = ssub.s32 128, 128
          %130 = vsyncadd %s124, %s129
          %s131 = smul.addr %s15, 128
          %s132 = scalar_lea.hbm %s0, %s131
          %s134 = sshll.u32 %s127, 4
          %s135 = int_to_ptr.vmem [resolvable:$true] %s134
          %137 = dma.hbm_to_vmem [thread:$0]  %s132, 128, %s135, %s124
        $region24: #{tpu_custom_call.1} parent=19 // pred_fallthru
          _
      $region20: #{tpu_custom_call.1} parent=5 // pred_fallthru
        _
      %p138 = scmp.le.s32.totalorder 1, %s15
      %p139 = scmp.lt.s32.totalorder %s15, 3
      %p140 = pnand %p138, %p139
      %p141 = pneg %p140
      // Predicated region
      $region25: #{tpu_custom_call.1} parent=5 // pred_check
        _
      $region26: #{tpu_custom_call.1} parent=5 // pred_check_branch
        %143 = sbr.rel (%p140) target = $region28
      $region27: #{tpu_custom_call.1} parent=5 // pred_region
        %s144 = ssub.s32 %s15, 1
        %s145 = sand.u32 %s28, 1
        %s146 = scalar_lea.sflag [#allocation3], %s145
        %s147 = sand.u32 %s28, 1
        %s148 = smul.addr %s147, 8
        %s149 = scalar_lea.vmem [#allocation2], %s148
        // Predicated region
        $region29: #{tpu_custom_call.1} parent=27 // pred_check
          %p150 = pneg %p41
        $region30: #{tpu_custom_call.1} parent=27 // pred_check_branch
          %152 = sbr.rel (%p150) target = $region32
        $region31: #{tpu_custom_call.1} parent=27 // pred_region
          %153 = dma.done %s146, 128
        $region32: #{tpu_custom_call.1} parent=27 // pred_fallthru
          _
        // Predicated region
        $region33: #{tpu_custom_call.1} parent=27 // pred_check
          %p154 = pneg %p62
        $region34: #{tpu_custom_call.1} parent=27 // pred_check_branch
          %156 = sbr.rel (%p154) target = $region36
        $region35: #{tpu_custom_call.1} parent=27 // pred_region
          %157 = dma.done [#allocation6], 4608
        $region36: #{tpu_custom_call.1} parent=27 // pred_fallthru
          _
        %s158 = sand.u32 %s28, 1
        %s159 = scalar_lea.sflag [#allocation3], %s158
        %s160 = sand.u32 %s28, 1
        %s161 = smul.addr %s160, 8
        %s162 = scalar_lea.vmem [#allocation2], %s161
        %p163 = pneg %p41
        %p164 = pneg %p38
        %p165 = pneg %p62
        %p166 = pneg %p59
        %p167 = pneg %p88
        %p168 = pneg %p85
        %s169 = sand.u32 %s75, 1
        %s170 = scalar_lea.sflag [#allocation4], %s169
        %s171 = sand.u32 %s75, 1
        %s172 = smul.addr %s171, 8
        %s173 = scalar_lea.vmem [#allocation7], %s172
        %v174 = vld [vmem:[%s149] sm:$0xff]
        %v175 = vld [vmem:[#allocation5] sm:$0xff]
        %v176 = vld [vmem:[#allocation5 + $0x8] sm:$0xff]
        %v177 = vld [vmem:[#allocation5 + $0x10] sm:$0x1]
        %vm178 = vcmp.eq.f32.partialorder %v174, 0.0
        %v179 = vsel %vm178, 1.0, 0.0
        %181 = vset.pattern.permute.xlu0 8
        %182 = vperm.xlu0 %181, %v179
        %v183 = vpop.permute.xlu0 %182
        %v185 = vlaneseq
        %v186 = vshrl.u32 %v185, 7
        %v187 = vsub.s32 0, %v186
        %v188 = vrot.slane %v177, %v187
        %v189 = vmul.f32 %v183, %v188
        %vm190 = vcmask 130048
        %v192 = vsel %vm190, %v174, 0
        %194 = vmatprep.subr.mxu0 0.0
        %195 = vmatpush1.msra.mxu0 %v175
        %196 = vmatprep.subr.mxu0 0.0
        %197 = vmatpush1.msra.mxu0 %v176
        %198 = vmatprep.subr.mxu0 0.0
        %199 = vmatpush1.msra.mxu0 0.0
        %200 = vmatprep.subr.mxu0 0.0
        %201 = vmatpush1.msra.mxu0 0.0
        %202 = vmatprep.subr.mxu0 0.0
        %203 = vmatpush1.msra.mxu0 0.0
        %204 = vmatprep.subr.mxu0 0.0
        %205 = vmatpush1.msra.mxu0 0.0
        %206 = vmatprep.subr.mxu0 0.0
        %207 = vmatpush1.msra.mxu0 0.0
        %208 = vmatprep.subr.mxu0 0.0
        %209 = vmatpush1.msra.mxu0 0.0
        %210 = vmatprep.subr.mxu0 0.0
        %211 = vmatpush1.msra.mxu0 0.0
        %212 = vmatprep.subr.mxu0 0.0
        %213 = vmatpush1.msra.mxu0 0.0
        %214 = vmatprep.subr.mxu0 0.0
        %215 = vmatpush1.msra.mxu0 0.0
        %216 = vmatprep.subr.mxu0 0.0
        %217 = vmatpush1.msra.mxu0 0.0
        %218 = vmatprep.subr.mxu0 0.0
        %219 = vmatpush1.msra.mxu0 0.0
        %220 = vmatprep.subr.mxu0 0.0
        %221 = vmatpush1.msra.mxu0 0.0
        %222 = vmatprep.subr.mxu0 0.0
        %223 = vmatpush1.msra.mxu0 0.0
        %224 = vmatprep.subr.mxu0 0.0
        %225 = vmatpush1.msra.mxu0 0.0
        %226 = vmatprep.subr.mxu0 0.0
        %227 = vmatpush1.msra.mxu0 0.0
        %228 = vmatprep.subr.mxu0 0.0
        %229 = vmatpush1.msra.mxu0 0.0
        %230 = vmatprep.subr.mxu0 0.0
        %231 = vmatpush1.msra.mxu0 0.0
        %232 = vmatprep.subr.mxu0 0.0
        %233 = vmatpush1.msra.mxu0 0.0
        %234 = vmatprep.subr.mxu0 0.0
        %235 = vmatpush1.msra.mxu0 0.0
        %236 = vmatprep.subr.mxu0 0.0
        %237 = vmatpush1.msra.mxu0 0.0
        %238 = vmatprep.subr.mxu0 0.0
        %239 = vmatpush1.msra.mxu0 0.0
        %240 = vmatprep.subr.mxu0 0.0
        %241 = vmatpush1.msra.mxu0 0.0
        %242 = vmatprep.subr.mxu0 0.0
        %243 = vmatpush1.msra.mxu0 0.0
        %244 = vmatprep.subr.mxu0 0.0
        %245 = vmatpush1.msra.mxu0 0.0
        %246 = vmatprep.subr.mxu0 0.0
        %247 = vmatpush1.msra.mxu0 0.0
        %248 = vmatprep.subr.mxu0 0.0
        %249 = vmatpush1.msra.mxu0 0.0
        %250 = vmatprep.subr.mxu0 0.0
        %251 = vmatpush1.msra.mxu0 0.0
        %252 = vmatprep.subr.mxu0 0.0
        %253 = vmatpush1.msra.mxu0 0.0
        %254 = vmatprep.subr.mxu0 0.0
        %255 = vmatpush1.msra.mxu0 0.0
        %256 = vmatprep.subr.mxu0 0.0
        %257 = vmatpush1.msra.mxu0 0.0
        %258 = vmatprep.mubr.f32.mxu0 0.0
        %259 = vmatmul.mubr.f32.gmra.mrb[0].mxu0 %v192
        %v260 = vpop.f32.mrb[0].mxu0
        %v261 = vadd.f32 %v189, %v260
        %v262 = vpop.f32.mrb[0].mxu0
        %263 = vdwg.mxu0
        %v264 = vld [vmem:[#allocation5 + $0x11] sm:$0x1]
        %vm265 = vcmp.eq.f32.partialorder %v174, 1.0
        %v266 = vsel %vm265, 1.0, 0.0
        %268 = vset.pattern.permute.xlu0 8
        %269 = vperm.xlu0 %268, %v266
        %v270 = vpop.permute.xlu0 %269
        %v272 = vlaneseq
        %v273 = vshrl.u32 %v272, 7
        %v274 = vsub.s32 0, %v273
        %v275 = vrot.slane %v264, %v274
        %v276 = vmul.f32 %v270, %v275
        %v277 = vadd.f32 %v261, %v276
        %v278 = vld [vmem:[#allocation5 + $0x12] sm:$0x1]
        %vm279 = vcmp.eq.f32.partialorder %v174, 2.0
        %v280 = vsel %vm279, 1.0, 0.0
        %282 = vset.pattern.permute.xlu0 8
        %283 = vperm.xlu0 %282, %v280
        %v284 = vpop.permute.xlu0 %283
        %v286 = vlaneseq
        %v287 = vshrl.u32 %v286, 7
        %v288 = vsub.s32 0, %v287
        %v289 = vrot.slane %v278, %v288
        %v290 = vmul.f32 %v284, %v289
        %v291 = vadd.f32 %v277, %v290
        %v292 = vld [vmem:[#allocation5 + $0x13] sm:$0x1]
        %vm293 = vcmp.eq.f32.partialorder %v174, 3.0
        %v294 = vsel %vm293, 1.0, 0.0
        %296 = vset.pattern.permute.xlu0 8
        %297 = vperm.xlu0 %296, %v294
        %v298 = vpop.permute.xlu0 %297
        %v300 = vlaneseq
        %v301 = vshrl.u32 %v300, 7
        %v302 = vsub.s32 0, %v301
        %v303 = vrot.slane %v292, %v302
        %v304 = vmul.f32 %v298, %v303
        %v305 = vadd.f32 %v291, %v304
        %v306 = vld [vmem:[#allocation5 + $0x14] sm:$0x1]
        %vm307 = vcmp.eq.f32.partialorder %v174, 4.0
        %v308 = vsel %vm307, 1.0, 0.0
        %310 = vset.pattern.permute.xlu0 8
        %311 = vperm.xlu0 %310, %v308
        %v312 = vpop.permute.xlu0 %311
        %v314 = vlaneseq
        %v315 = vshrl.u32 %v314, 7
        %v316 = vsub.s32 0, %v315
        %v317 = vrot.slane %v306, %v316
        %v318 = vmul.f32 %v312, %v317
        %v319 = vadd.f32 %v305, %v318
        %v320 = vld [vmem:[#allocation5 + $0x118] sm:$0x1]
        %v321 = vlaneseq
        %v322 = vshrl.u32 %v321, 7
        %v323 = vsub.s32 0, %v322
        %v324 = vrot.slane %v320, %v323
        %v325 = vadd.f32 %v319, %v324
        %v326 = vmax.f32 %v325, 0.0
        %v327 = vld [vmem:[#allocation5 + $0x18] sm:$0xff]
        %v328 = vld [vmem:[#allocation5 + $0x20] sm:$0xff]
        %v329 = vld [vmem:[#allocation5 + $0x28] sm:$0xff]
        %v330 = vld [vmem:[#allocation5 + $0x30] sm:$0xff]
        %v331 = vld [vmem:[#allocation5 + $0x38] sm:$0xff]
        %v332 = vld [vmem:[#allocation5 + $0x40] sm:$0xff]
        %v333 = vld [vmem:[#allocation5 + $0x48] sm:$0xff]
        %v334 = vld [vmem:[#allocation5 + $0x50] sm:$0xff]
        %v335 = vld [vmem:[#allocation5 + $0x58] sm:$0xff]
        %v336 = vld [vmem:[#allocation5 + $0x60] sm:$0xff]
        %v337 = vld [vmem:[#allocation5 + $0x68] sm:$0xff]
        %v338 = vld [vmem:[#allocation5 + $0x70] sm:$0xff]
        %v339 = vld [vmem:[#allocation5 + $0x78] sm:$0xff]
        %v340 = vld [vmem:[#allocation5 + $0x80] sm:$0xff]
        %v341 = vld [vmem:[#allocation5 + $0x88] sm:$0xff]
        %v342 = vld [vmem:[#allocation5 + $0x90] sm:$0xff]
        %v343 = vld [vmem:[#allocation5 + $0x119] sm:$0x1]
        %v344 = vlaneseq
        %v345 = vshrl.u32 %v344, 7
        %v346 = vsub.s32 0, %v345
        %v347 = vrot.slane %v343, %v346
        %348 = vmatprep.subr.mxu0 0.0
        %349 = vmatpush1.msra.mxu0 %v327
        %350 = vmatprep.subr.mxu0 0.0
        %351 = vmatpush1.msra.mxu0 %v328
        %352 = vmatprep.subr.mxu0 0.0
        %353 = vmatpush1.msra.mxu0 %v329
        %354 = vmatprep.subr.mxu0 0.0
        %355 = vmatpush1.msra.mxu0 %v330
        %356 = vmatprep.subr.mxu0 0.0
        %357 = vmatpush1.msra.mxu0 %v331
        %358 = vmatprep.subr.mxu0 0.0
        %359 = vmatpush1.msra.mxu0 %v332
        %360 = vmatprep.subr.mxu0 0.0
        %361 = vmatpush1.msra.mxu0 %v333
        %362 = vmatprep.subr.mxu0 0.0
        %363 = vmatpush1.msra.mxu0 %v334
        %364 = vmatprep.subr.mxu0 0.0
        %365 = vmatpush1.msra.mxu0 %v335
        %366 = vmatprep.subr.mxu0 0.0
        %367 = vmatpush1.msra.mxu0 %v336
        %368 = vmatprep.subr.mxu0 0.0
        %369 = vmatpush1.msra.mxu0 %v337
        %370 = vmatprep.subr.mxu0 0.0
        %371 = vmatpush1.msra.mxu0 %v338
        %372 = vmatprep.subr.mxu0 0.0
        %373 = vmatpush1.msra.mxu0 %v339
        %374 = vmatprep.subr.mxu0 0.0
        %375 = vmatpush1.msra.mxu0 %v340
        %376 = vmatprep.subr.mxu0 0.0
        %377 = vmatpush1.msra.mxu0 %v341
        %378 = vmatprep.subr.mxu0 0.0
        %379 = vmatpush1.msra.mxu0 %v342
        %380 = vmatprep.subr.mxu0 0.0
        %381 = vmatpush1.msra.mxu0 0.0
        %382 = vmatprep.subr.mxu0 0.0
        %383 = vmatpush1.msra.mxu0 0.0
        %384 = vmatprep.subr.mxu0 0.0
        %385 = vmatpush1.msra.mxu0 0.0
        %386 = vmatprep.subr.mxu0 0.0
        %387 = vmatpush1.msra.mxu0 0.0
        %388 = vmatprep.subr.mxu0 0.0
        %389 = vmatpush1.msra.mxu0 0.0
        %390 = vmatprep.subr.mxu0 0.0
        %391 = vmatpush1.msra.mxu0 0.0
        %392 = vmatprep.subr.mxu0 0.0
        %393 = vmatpush1.msra.mxu0 0.0
        %394 = vmatprep.subr.mxu0 0.0
        %395 = vmatpush1.msra.mxu0 0.0
        %396 = vmatprep.subr.mxu0 0.0
        %397 = vmatpush1.msra.mxu0 0.0
        %398 = vmatprep.subr.mxu0 0.0
        %399 = vmatpush1.msra.mxu0 0.0
        %400 = vmatprep.subr.mxu0 0.0
        %401 = vmatpush1.msra.mxu0 0.0
        %402 = vmatprep.subr.mxu0 0.0
        %403 = vmatpush1.msra.mxu0 0.0
        %404 = vmatprep.subr.mxu0 0.0
        %405 = vmatpush1.msra.mxu0 0.0
        %406 = vmatprep.subr.mxu0 0.0
        %407 = vmatpush1.msra.mxu0 0.0
        %408 = vmatprep.subr.mxu0 0.0
        %409 = vmatpush1.msra.mxu0 0.0
        %410 = vmatprep.subr.mxu0 0.0
        %411 = vmatpush1.msra.mxu0 0.0
        %412 = vmatprep.mubr.f32.mxu0 0.0
        %413 = vmatmul.mubr.f32.gmra.mrb[0].mxu0 %v326
        %v414 = vpop.f32.mrb[0].mxu0
        %v415 = vadd.f32 %v347, %v414
        %v416 = vpop.f32.mrb[0].mxu0
        %417 = vdwg.mxu0
        %v418 = vmax.f32 %v415, 0.0
        %v419 = vld [vmem:[#allocation5 + $0x98] sm:$0xff]
        %v420 = vld [vmem:[#allocation5 + $0xa0] sm:$0xff]
        %v421 = vld [vmem:[#allocation5 + $0xa8] sm:$0xff]
        %v422 = vld [vmem:[#allocation5 + $0xb0] sm:$0xff]
        %v423 = vld [vmem:[#allocation5 + $0xb8] sm:$0xff]
        %v424 = vld [vmem:[#allocation5 + $0xc0] sm:$0xff]
        %v425 = vld [vmem:[#allocation5 + $0xc8] sm:$0xff]
        %v426 = vld [vmem:[#allocation5 + $0xd0] sm:$0xff]
        %v427 = vld [vmem:[#allocation5 + $0xd8] sm:$0xff]
        %v428 = vld [vmem:[#allocation5 + $0xe0] sm:$0xff]
        %v429 = vld [vmem:[#allocation5 + $0xe8] sm:$0xff]
        %v430 = vld [vmem:[#allocation5 + $0xf0] sm:$0xff]
        %v431 = vld [vmem:[#allocation5 + $0xf8] sm:$0xff]
        %v432 = vld [vmem:[#allocation5 + $0x100] sm:$0xff]
        %v433 = vld [vmem:[#allocation5 + $0x108] sm:$0xff]
        %v434 = vld [vmem:[#allocation5 + $0x110] sm:$0xff]
        %v435 = vld [vmem:[#allocation5 + $0x11a] sm:$0x1]
        %v436 = vlaneseq
        %v437 = vshrl.u32 %v436, 7
        %v438 = vsub.s32 0, %v437
        %v439 = vrot.slane %v435, %v438
        %440 = vmatprep.subr.mxu0 0.0
        %441 = vmatpush1.msra.mxu0 %v419
        %442 = vmatprep.subr.mxu0 0.0
        %443 = vmatpush1.msra.mxu0 %v420
        %444 = vmatprep.subr.mxu0 0.0
        %445 = vmatpush1.msra.mxu0 %v421
        %446 = vmatprep.subr.mxu0 0.0
        %447 = vmatpush1.msra.mxu0 %v422
        %448 = vmatprep.subr.mxu0 0.0
        %449 = vmatpush1.msra.mxu0 %v423
        %450 = vmatprep.subr.mxu0 0.0
        %451 = vmatpush1.msra.mxu0 %v424
        %452 = vmatprep.subr.mxu0 0.0
        %453 = vmatpush1.msra.mxu0 %v425
        %454 = vmatprep.subr.mxu0 0.0
        %455 = vmatpush1.msra.mxu0 %v426
        %456 = vmatprep.subr.mxu0 0.0
        %457 = vmatpush1.msra.mxu0 %v427
        %458 = vmatprep.subr.mxu0 0.0
        %459 = vmatpush1.msra.mxu0 %v428
        %460 = vmatprep.subr.mxu0 0.0
        %461 = vmatpush1.msra.mxu0 %v429
        %462 = vmatprep.subr.mxu0 0.0
        %463 = vmatpush1.msra.mxu0 %v430
        %464 = vmatprep.subr.mxu0 0.0
        %465 = vmatpush1.msra.mxu0 %v431
        %466 = vmatprep.subr.mxu0 0.0
        %467 = vmatpush1.msra.mxu0 %v432
        %468 = vmatprep.subr.mxu0 0.0
        %469 = vmatpush1.msra.mxu0 %v433
        %470 = vmatprep.subr.mxu0 0.0
        %471 = vmatpush1.msra.mxu0 %v434
        %472 = vmatprep.subr.mxu0 0.0
        %473 = vmatpush1.msra.mxu0 0.0
        %474 = vmatprep.subr.mxu0 0.0
        %475 = vmatpush1.msra.mxu0 0.0
        %476 = vmatprep.subr.mxu0 0.0
        %477 = vmatpush1.msra.mxu0 0.0
        %478 = vmatprep.subr.mxu0 0.0
        %479 = vmatpush1.msra.mxu0 0.0
        %480 = vmatprep.subr.mxu0 0.0
        %481 = vmatpush1.msra.mxu0 0.0
        %482 = vmatprep.subr.mxu0 0.0
        %483 = vmatpush1.msra.mxu0 0.0
        %484 = vmatprep.subr.mxu0 0.0
        %485 = vmatpush1.msra.mxu0 0.0
        %486 = vmatprep.subr.mxu0 0.0
        %487 = vmatpush1.msra.mxu0 0.0
        %488 = vmatprep.subr.mxu0 0.0
        %489 = vmatpush1.msra.mxu0 0.0
        %490 = vmatprep.subr.mxu0 0.0
        %491 = vmatpush1.msra.mxu0 0.0
        %492 = vmatprep.subr.mxu0 0.0
        %493 = vmatpush1.msra.mxu0 0.0
        %494 = vmatprep.subr.mxu0 0.0
        %495 = vmatpush1.msra.mxu0 0.0
        %496 = vmatprep.subr.mxu0 0.0
        %497 = vmatpush1.msra.mxu0 0.0
        %498 = vmatprep.subr.mxu0 0.0
        %499 = vmatpush1.msra.mxu0 0.0
        %500 = vmatprep.subr.mxu0 0.0
        %501 = vmatpush1.msra.mxu0 0.0
        %502 = vmatprep.subr.mxu0 0.0
        %503 = vmatpush1.msra.mxu0 0.0
        %504 = vmatprep.mubr.f32.mxu0 0.0
        %505 = vmatmul.mubr.f32.gmra.mrb[0].mxu0 %v418
        %v506 = vpop.f32.mrb[0].mxu0
        %v507 = vadd.f32 %v439, %v506
        %v508 = vpop.f32.mrb[0].mxu0
        %509 = vdwg.mxu0
        %v510 = vxor.u32 %v507, 2147483648
        %v511 = vmul.f32 %v510, 1.442695
        %v512 = vpow.pop %v511
        %v513 = vadd.f32 %v512, 1.0
        %v514 = vrcp.pop %v513
        %v515 = vmul.f32 1.0, %v514
        %516 = vst [vmem:[%s173] sm:$0xff] %v515
        %s517 = sand.u32 %s75, 1
        %s518 = scalar_lea.sflag [#allocation4], %s517
        %s519 = sand.u32 %s75, 1
        %s520 = smul.addr %s519, 8
        %s521 = scalar_lea.vmem [#allocation7], %s520
        // Predicated region
        $region37: #{tpu_custom_call.1} parent=27 // pred_check
          %p522 = pneg %p85
        $region38: #{tpu_custom_call.1} parent=27 // pred_check_branch
          %524 = sbr.rel (%p522) target = $region40
        $region39: #{tpu_custom_call.1} parent=27 // pred_region
          %s526 = ssub.s32 128, 128
          %527 = vsyncadd %s518, %s526
          %s528 = smul.addr %s20, 128
          %s529 = scalar_lea.hbm %s2, %s528
          %s531 = sshll.u32 %s521, 4
          %s532 = int_to_ptr.vmem [resolvable:$true] %s531
          %534 = dma.vmem_to_hbm [thread:$0]  %s532, 128, %s529, %s518
        $region40: #{tpu_custom_call.1} parent=27 // pred_fallthru
          _
      $region28: #{tpu_custom_call.1} parent=5 // pred_fallthru
        _
      %p535 = scmp.le.s32.totalorder 2, %s15
      // Predicated region
      $region41: #{tpu_custom_call.1} parent=5 // pred_check
        %p536 = pneg %p535
      $region42: #{tpu_custom_call.1} parent=5 // pred_check_branch
        %538 = sbr.rel (%p536) target = $region44
      $region43: #{tpu_custom_call.1} parent=5 // pred_region
        %s539 = ssub.s32 %s15, 2
        // Predicated region
        $region45: #{tpu_custom_call.1} parent=43 // pred_check
          %p540 = pneg %p91
        $region46: #{tpu_custom_call.1} parent=43 // pred_check_branch
          %542 = sbr.rel (%p540) target = $region48
        $region47: #{tpu_custom_call.1} parent=43 // pred_region
          %s543 = sand.u32 %s76, 1
          %s544 = scalar_lea.sflag [#allocation4], %s543
          %s545 = sand.u32 %s76, 1
          %s546 = smul.addr %s545, 8
          %s547 = scalar_lea.vmem [#allocation7], %s546
          %548 = dma.done %s544, 128
        $region48: #{tpu_custom_call.1} parent=43 // pred_fallthru
          _
      $region44: #{tpu_custom_call.1} parent=5 // pred_fallthru
        _
    $region6: #{tpu_custom_call.1} parent=1 // loop_footer
      %s19 = sadd.s32 1, %s15
    $region7: #{tpu_custom_call.1} parent=1 // loop_footer_branch
      %14 = sbr.rel target = $region3
    $region8: #{tpu_custom_call.1} parent=1 // loop_exit
      _
    %549 = vsyncpa [#allocation3], 1
    %s550 = scalar_lea.sflag [#allocation3], 1
    %551 = vsyncpa %s550, 1
    %552 = vsyncpa [#allocation6], 1
    %553 = vsyncpa [#allocation4], 1
    %s554 = scalar_lea.sflag [#allocation4], 1
    %555 = vsyncpa %s554, 1

</llo_original>
